<compile_context>
chip_gen: v7x
topology: tpu7x:2x2x1
jax: 0.10.0
libtpu: 0.0.40
codegen_flags: <defaults>
</compile_context>

<pallas_src>
import functools
import math

import jax
import jax.numpy as jnp
from jax import lax
from jax.experimental import pallas as pl
from jax.experimental.pallas import tpu as pltpu


_INV_SQRT2 = 1.0 / math.sqrt(2.0)
_TANH_C = math.sqrt(2.0 / math.pi)


def _gelu_exact(v):
    # F.gelu default (exact, erf-based): 0.5 * v * (1 + erf(v / sqrt(2)))
    return 0.5 * v * (1.0 + lax.erf(v * _INV_SQRT2))


def _gelu_tanh(v):
    # Approximate GELU; tanh goes to the EUP slot (useful only if VALU-bound).
    return 0.5 * v * (1.0 + jnp.tanh(_TANH_C * (v + 0.044715 * v * v * v)))


def _probed_ffn_kernel(n_layers, approx_gelu,
                       x_ref, w_in_ref, b_in_ref,
                       w_h_ref, b_h_ref,
                       w_out_ref, b_out_ref,
                       y_ref, probe_ref,
                       h_ref):
    # Per grid step (bi, l):
    #   x_ref:     (block_b, n_inputs)      w_in_ref: (n_inputs, d_model)
    #   w_h_ref:   (1, d_model, d_model)    b_h_ref:  (n_layers, d_model)  [resident]
    #   w_out_ref: (d_model, n_outputs)
    #   y_ref:     (block_b, n_outputs)     probe_ref: (1, block_b, d_model)
    #   h_ref:     VMEM scratch (block_b, d_model), compute dtype, carried.
    l = pl.program_id(1)
    gelu = _gelu_tanh if approx_gelu else _gelu_exact

    @pl.when(l == 0)
    def _in_proj():
        h = jnp.dot(x_ref[...], w_in_ref[...],
                    preferred_element_type=jnp.float32)
        h = gelu(h + b_in_ref[...])
        h_ref[...] = h.astype(h_ref.dtype)
        probe_ref[...] = h.astype(probe_ref.dtype)[None, :, :]

    @pl.when(jnp.logical_and(l >= 1, l <= n_layers))
    def _hidden():
        lh = jnp.minimum(jnp.maximum(l - 1, 0), n_layers - 1)
        w = w_h_ref[0]                         # (d_model, d_model), streamed
        b = b_h_ref[pl.ds(lh, 1), :]           # (1, d_model), resident, f32
        h = jnp.dot(h_ref[...], w, preferred_element_type=jnp.float32)
        h = gelu(h + b)
        h_ref[...] = h.astype(h_ref.dtype)
        probe_ref[...] = h.astype(probe_ref.dtype)[None, :, :]

    @pl.when(l == n_layers + 1)
    def _out_proj():
        y = jnp.dot(h_ref[...], w_out_ref[...],
                    preferred_element_type=jnp.float32)
        y_ref[...] = (y + b_out_ref[...]).astype(y_ref.dtype)
        # No probe store here: this step revisits the probe block written at
        # step n_layers, so the VMEM buffer already holds the correct data.


def _device_info():
    kind = ""
    try:
        kind = jax.devices()[0].device_kind.lower()
    except Exception:
        pass
    vmem_cap = None
    try:
        vmem_cap = int(pltpu.get_tpu_info().vmem_capacity_bytes)
    except Exception:
        vmem_cap = None
    if vmem_cap is None:
        vmem_cap = (64 << 20) if "v7" in kind else (128 << 20)
    num_cores = 2 if "v7" in kind else 1
    # v5e MXU fills at M=128; 256 balances its 0.82 TB/s HBM.  v6e/v7x want
    # M>=256 and a much larger block_b to leave the weight-DMA-bound regime.
    block_cap = 256 if "v5" in kind else 1024
    return vmem_cap, num_cores, block_cap


def _round_up(n, m):
    return ((n + m - 1) // m) * m


def _vmem_budget_bytes(block_b, d_model, n_inputs, n_outputs, n_layers,
                       w_itemsize, h_itemsize, probe_itemsize):
    db = 2  # Pallas double-buffers pipelined blocks.
    b = 0
    b += db * d_model * d_model * w_itemsize                        # w_h tile
    b += db * block_b * _round_up(d_model, 128) * probe_itemsize    # probe tile
    b += block_b * d_model * h_itemsize                             # h scratch
    b += db * block_b * _round_up(n_inputs, 128) * h_itemsize       # x tile
    b += db * block_b * _round_up(n_outputs, 128) * 4               # y tile
    b += db * _round_up(n_inputs, 8) * d_model * w_itemsize         # w_in
    b += db * d_model * _round_up(n_outputs, 128) * w_itemsize      # w_out
    b += db * (_round_up(n_layers, 8) + 16) * _round_up(d_model, 128) * 4  # biases
    return b


def probed_feed_forward(x, params, *, block_b=None, probe_dtype=None,
                        gelu_approximate=False, vmem_limit_bytes=None):
    """Forward pass of ProbedFeedForward.

    x: (n_inputs,) -> (y: (n_outputs,), probe: (n_layers+1, d_model))
       (exactly the PyTorch module semantics), or
    x: (B, n_inputs) -> (y: (B, n_outputs), probe: (n_layers+1, B, d_model)).
    Weights may be f32 or bf16; MXU accumulation is always f32.  With bf16
    weights the carried activation h (and hence the probe values) are
    bf16-rounded between layers.
    """
    w_in, b_in, w_h, b_h, w_out, b_out = params
    squeeze = (x.ndim == 1)
    if squeeze:
        x = x[None, :]

    n_layers, d_model, _ = w_h.shape
    n_inputs = w_in.shape[0]
    n_outputs = w_out.shape[1]
    assert n_layers >= 1

    compute_dtype = w_h.dtype
    probe_dtype = jnp.float32 if probe_dtype is None else probe_dtype

    # Cast inputs/weights once in the wrapper (no in-kernel casts of x / w).
    x = x.astype(compute_dtype)
    w_in = w_in.astype(compute_dtype)
    w_h = w_h.astype(compute_dtype)
    w_out = w_out.astype(compute_dtype)
    b_in2 = b_in.astype(jnp.float32).reshape(1, d_model)
    b_h2 = b_h.astype(jnp.float32).reshape(n_layers, d_model)
    b_out2 = b_out.astype(jnp.float32).reshape(1, n_outputs)

    B = x.shape[0]
    vmem_cap, num_cores, block_cap = _device_info()
    w_itemsize = jnp.dtype(compute_dtype).itemsize
    probe_itemsize = jnp.dtype(probe_dtype).itemsize

    if block_b is None:
        # Prefer ONE batch tile (weights streamed exactly once); on dual-TC
        # chips give each core a tile when the batch is big enough.
        tiles = num_cores if B >= 16 * num_cores else 1
        cand = -(-B // tiles)
        block_b = max(8, min(_round_up(cand, 8), block_cap))
    else:
        block_b = max(8, _round_up(int(block_b), 8))
    # Shrink block_b until the double-buffered working set fits VMEM.
    while block_b > 8 and _vmem_budget_bytes(
            block_b, d_model, n_inputs, n_outputs, n_layers,
            w_itemsize, w_itemsize, probe_itemsize) > int(0.85 * vmem_cap):
        block_b = max(8, _round_up(block_b // 2, 8))

    B_pad = _round_up(B, block_b)
    if B_pad != B:
        x = jnp.pad(x, ((0, B_pad - B), (0, 0)))
    num_b = B_pad // block_b

    if vmem_limit_bytes is None:
        budget = _vmem_budget_bytes(block_b, d_model, n_inputs, n_outputs,
                                    n_layers, w_itemsize, w_itemsize,
                                    probe_itemsize)
        vmem_limit_bytes = int(min(max(int(budget * 1.25) + (1 << 20), 32 << 20),
                                   vmem_cap - (2 << 20)))

    last_h = n_layers - 1

    def wh_map(bi, l):
        # step 0 prefetches layer 0; step n_layers+1 keeps the last layer
        # resident (no extra DMA).
        return (jnp.minimum(jnp.maximum(l - 1, 0), last_h), 0, 0)

    def probe_map(bi, l):
        return (jnp.minimum(l, n_layers), bi, 0)

    grid_spec = pltpu.PrefetchScalarGridSpec(
        num_scalar_prefetch=0,
        grid=(num_b, n_layers + 2),
        in_specs=[
            pl.BlockSpec((block_b, n_inputs), lambda bi, l: (bi, 0)),     # x
            pl.BlockSpec((n_inputs, d_model), lambda bi, l: (0, 0)),      # w_in
            pl.BlockSpec((1, d_model), lambda bi, l: (0, 0)),             # b_in
            pl.BlockSpec((1, d_model, d_model), wh_map),                  # w_h (streamed)
            pl.BlockSpec((n_layers, d_model), lambda bi, l: (0, 0)),      # b_h (resident)
            pl.BlockSpec((d_model, n_outputs), lambda bi, l: (0, 0)),     # w_out
            pl.BlockSpec((1, n_outputs), lambda bi, l: (0, 0)),           # b_out
        ],
        out_specs=(
            pl.BlockSpec((block_b, n_outputs), lambda bi, l: (bi, 0)),    # y
            pl.BlockSpec((1, block_b, d_model), probe_map),               # probe
        ),
        scratch_shapes=[pltpu.VMEM((block_b, d_model), compute_dtype)],
    )

    compiler_params = pltpu.CompilerParams(
        dimension_semantics=("parallel", "arbitrary"),
        vmem_limit_bytes=int(vmem_limit_bytes))

    flops = 2 * B_pad * (n_inputs * d_model
                         + n_layers * d_model * d_model
                         + d_model * n_outputs)
    transcendentals = B_pad * d_model * (n_layers + 1)
    bytes_accessed = (
        B_pad * n_inputs * w_itemsize
        + (n_inputs * d_model + d_model * n_outputs) * w_itemsize
        + num_b * n_layers * d_model * d_model * w_itemsize
        + (n_layers + 2) * d_model * 4
        + B_pad * n_outputs * 4
        + (n_layers + 1) * B_pad * d_model * probe_itemsize)
    cost = pl.CostEstimate(flops=flops, transcendentals=transcendentals,
                           bytes_accessed=bytes_accessed)

    kernel = functools.partial(_probed_ffn_kernel, n_layers, gelu_approximate)
    y, probe = pl.pallas_call(
        kernel,
        grid_spec=grid_spec,
        out_shape=(
            jax.ShapeDtypeStruct((B_pad, n_outputs), jnp.float32),
            jax.ShapeDtypeStruct((n_layers + 1, B_pad, d_model), probe_dtype),
        ),
        compiler_params=compiler_params,
        cost_estimate=cost,
    )(x, w_in, b_in2, w_h, b_h2, w_out, b_out2)

    if B_pad != B:
        y = y[:B]
        probe = probe[:, :B, :]
    if squeeze:
        return y[0], probe[:, 0, :]
    return y, probe


def init_params(key, n_layers, n_inputs, d_model, n_outputs):
    """Deterministic synthetic init (uniform, PyTorch-Linear-like scaling)."""
    ks = jax.random.split(key, 2 * (n_layers + 2))
    ki = iter(range(len(ks)))

    def lin(kw, kb, fan_in, fan_out):
        bound = 1.0 / math.sqrt(fan_in)
        w = jax.random.uniform(kw, (fan_in, fan_out), jnp.float32, -bound, bound)
        b = jax.random.uniform(kb, (fan_out,), jnp.float32, -bound, bound)
        return w, b

    w_in, b_in = lin(ks[next(ki)], ks[next(ki)], n_inputs, d_model)
    w_h_list, b_h_list = [], []
    for _ in range(n_layers):
        w, b = lin(ks[next(ki)], ks[next(ki)], d_model, d_model)
        w_h_list.append(w)
        b_h_list.append(b)
    w_out, b_out = lin(ks[next(ki)], ks[next(ki)], d_model, n_outputs)
    w_h = jnp.stack(w_h_list)   # (n_layers, d_model, d_model)
    b_h = jnp.stack(b_h_list)   # (n_layers, d_model)
    return w_in, b_in, w_h, b_h, w_out, b_out


def _reference(x, params):
    w_in, b_in, w_h, b_h, w_out, b_out = params
    n_layers = w_h.shape[0]
    x2 = x if x.ndim == 2 else x[None, :]
    h = jax.nn.gelu(x2 @ w_in + b_in[None, :], approximate=False)
    rows = [h]
    for i in range(n_layers):
        h = jax.nn.gelu(h @ w_h[i] + b_h[i][None, :], approximate=False)
        rows.append(h)
    y = h @ w_out + b_out[None, :]
    probe = jnp.stack(rows, axis=0)   # (n_layers + 1, B, d_model)
    if x.ndim == 1:
        return y[0], probe[:, 0, :]
    return y, probe


if __name__ == "__main__":
    n_layers, n_inputs, d_model, n_outputs = 2, 16, 32, 8
    B = 16

    key = jax.random.PRNGKey(0)
    kx, kb, kp = jax.random.split(key, 3)
    params = init_params(kp, n_layers, n_inputs, d_model, n_outputs)

    # 1) Single-vector call: exact PyTorch-module semantics (probe buffer shape).
    x1 = jax.random.normal(kx, (n_inputs,), jnp.float32)
    y1, probe1 = probed_feed_forward(x1, params)
    jax.block_until_ready((y1, probe1))
    y1_ref, probe1_ref = _reference(x1, params)
    assert y1.shape == (n_outputs,) and probe1.shape == (n_layers + 1, d_model)
    assert jnp.allclose(y1, y1_ref, atol=1e-4, rtol=1e-4)
    assert jnp.allclose(probe1, probe1_ref, atol=1e-4, rtol=1e-4)

    # 2) Batched call with forced multi-tile batch grid (exercises layer streaming
    #    + probe revisit with num_b > 1).
    xb = jax.random.normal(kb, (B, n_inputs), jnp.float32)
    yb, probeb = probed_feed_forward(xb, params, block_b=8)
    jax.block_until_ready((yb, probeb))
    yb_ref, probeb_ref = _reference(xb, params)
    assert jnp.allclose(yb, yb_ref, atol=1e-4, rtol=1e-4)
    assert jnp.allclose(probeb, probeb_ref, atol=1e-4, rtol=1e-4)

    # 3) Ragged batch (B=13): wrapper pads to a multiple of block_b and slices back.
    xr = xb[:13]
    yr, prober = probed_feed_forward(xr, params)
    jax.block_until_ready((yr, prober))
    yr_ref, prober_ref = _reference(xr, params)
    assert yr.shape == (13, n_outputs) and prober.shape == (n_layers + 1, 13, d_model)
    assert jnp.allclose(yr, yr_ref, atol=1e-4, rtol=1e-4)
    assert jnp.allclose(prober, prober_ref, atol=1e-4, rtol=1e-4)

    # 4) bf16 weights + bf16 probe (halved weight streaming and probe writeback),
    #    f32 MXU accumulation; activations are bf16-rounded between layers.
    params_bf16 = (params[0].astype(jnp.bfloat16), params[1],
                   params[2].astype(jnp.bfloat16), params[3],
                   params[4].astype(jnp.bfloat16), params[5])
    yq, probeq = probed_feed_forward(xb, params_bf16, probe_dtype=jnp.bfloat16)
    jax.block_until_ready((yq, probeq))
    assert jnp.allclose(yq, yb_ref, atol=1e-1, rtol=1e-1)
    assert jnp.allclose(probeq.astype(jnp.float32), probeb_ref, atol=1e-1, rtol=1e-1)

    print("KERNEL_OK")
</pallas_src>

<mosaic_0001>
module attributes {stable_mosaic.version = 11 : i64} {
  func.func @_probed_ffn_kernel(%arg0: i32, %arg1: i32, %arg2: memref<8x16xf32, #tpu.memory_space<vmem>>, %arg3: memref<16x32xf32, #tpu.memory_space<vmem>>, %arg4: memref<1x32xf32, #tpu.memory_space<vmem>>, %arg5: memref<1x32x32xf32, #tpu.memory_space<vmem>>, %arg6: memref<2x32xf32, #tpu.memory_space<vmem>>, %arg7: memref<32x8xf32, #tpu.memory_space<vmem>>, %arg8: memref<1x8xf32, #tpu.memory_space<vmem>>, %arg9: memref<8x8xf32, #tpu.memory_space<vmem>>, %arg10: memref<1x8x32xf32, #tpu.memory_space<vmem>>, %arg11: memref<8x32xf32, #tpu.memory_space<vmem>>) attributes {dimension_semantics = [#tpu.dimension_semantics<parallel>, #tpu.dimension_semantics<arbitrary>], iteration_bounds = array<i64: 1, 4>, scalar_prefetch = 0 : i64, scratch_operands = 1 : i64, tpu.core_type = #tpu.core_type<tc>, window_params = [{transform_indices = @transform_0, window_bounds = array<i64: 8, 16>}, {pipeline_mode = #tpu.pipeline_mode<synchronous>, transform_indices = @transform_1, window_bounds = array<i64: 16, 32>}, {pipeline_mode = #tpu.pipeline_mode<synchronous>, transform_indices = @transform_2, window_bounds = array<i64: 1, 32>}, {transform_indices = @transform_3, window_bounds = array<i64: 1, 32, 32>}, {pipeline_mode = #tpu.pipeline_mode<synchronous>, transform_indices = @transform_4, window_bounds = array<i64: 2, 32>}, {pipeline_mode = #tpu.pipeline_mode<synchronous>, transform_indices = @transform_5, window_bounds = array<i64: 32, 8>}, {pipeline_mode = #tpu.pipeline_mode<synchronous>, transform_indices = @transform_6, window_bounds = array<i64: 1, 8>}, {transform_indices = @transform_7, window_bounds = array<i64: 8, 8>}, {transform_indices = @transform_8, window_bounds = array<i64: 1, 8, 32>}]} {
    %c0_i32 = arith.constant 0 : i32
    %0 = arith.cmpi eq, %arg1, %c0_i32 : i32
    %1 = arith.extui %0 : i1 to i32
    %c0_i32_0 = arith.constant 0 : i32
    %2 = arith.cmpi ne, %1, %c0_i32_0 : i32
    scf.if %2 {
      %c0 = arith.constant 0 : index
      %c0_3 = arith.constant 0 : index
      %11 = vector.load %arg2[%c0, %c0_3] : memref<8x16xf32, #tpu.memory_space<vmem>>, vector<8x16xf32>
      %c0_4 = arith.constant 0 : index
      %c0_5 = arith.constant 0 : index
      %12 = vector.load %arg3[%c0_4, %c0_5] : memref<16x32xf32, #tpu.memory_space<vmem>>, vector<16x32xf32>
      %cst = arith.constant dense<0.000000e+00> : vector<8x32xf32>
      %13 = tpu.matmul %11, %12, %cst {dimension_numbers = #tpu.dot_dimension_numbers<[1], [0], [0], [1], [0, 0, 1, 1], [], []>} : vector<8x16xf32>, vector<16x32xf32>, vector<8x32xf32> -> vector<8x32xf32>
      %c0_6 = arith.constant 0 : index
      %c0_7 = arith.constant 0 : index
      %14 = vector.load %arg4[%c0_6, %c0_7] : memref<1x32xf32, #tpu.memory_space<vmem>>, vector<1x32xf32>
      %15 = vector.broadcast %14 : vector<1x32xf32> to vector<8x32xf32>
      %16 = arith.addf %13, %15 : vector<8x32xf32>
      %cst_8 = arith.constant 5.000000e-01 : f32
      %17 = vector.broadcast %cst_8 : f32 to vector<8x32xf32>
      %18 = arith.mulf %17, %16 : vector<8x32xf32>
      %cst_9 = arith.constant 0.707106769 : f32
      %19 = vector.broadcast %cst_9 : f32 to vector<8x32xf32>
      %20 = arith.mulf %16, %19 : vector<8x32xf32>
      %21 = math.erf %20 : vector<8x32xf32>
      %cst_10 = arith.constant 1.000000e+00 : f32
      %22 = vector.broadcast %cst_10 : f32 to vector<8x32xf32>
      %23 = arith.addf %22, %21 : vector<8x32xf32>
      %24 = arith.mulf %18, %23 : vector<8x32xf32>
      %c0_11 = arith.constant 0 : index
      %c0_12 = arith.constant 0 : index
      %25 = vector.load %arg11[%c0_11, %c0_12] : memref<8x32xf32, #tpu.memory_space<vmem>>, vector<8x32xf32>
      tpu.vector_store %arg11[%c0_11, %c0_12], %24 {strides = array<i32>} : memref<8x32xf32, #tpu.memory_space<vmem>>, vector<8x32xf32>,
      %26 = vector.shape_cast %24 : vector<8x32xf32> to vector<1x8x32xf32>
      %c0_13 = arith.constant 0 : index
      %c0_14 = arith.constant 0 : index
      %c0_15 = arith.constant 0 : index
      %27 = vector.load %arg10[%c0_13, %c0_14, %c0_15] : memref<1x8x32xf32, #tpu.memory_space<vmem>>, vector<1x8x32xf32>
      tpu.vector_store %arg10[%c0_13, %c0_14, %c0_15], %26 {strides = array<i32>} : memref<1x8x32xf32, #tpu.memory_space<vmem>>, vector<1x8x32xf32>,
    } else {
    }
    %c1_i32 = arith.constant 1 : i32
    %3 = arith.cmpi sge, %arg1, %c1_i32 : i32
    %c2_i32 = arith.constant 2 : i32
    %4 = arith.cmpi sle, %arg1, %c2_i32 : i32
    %5 = arith.andi %3, %4 : i1
    %6 = arith.extui %5 : i1 to i32
    %c0_i32_1 = arith.constant 0 : i32
    %7 = arith.cmpi ne, %6, %c0_i32_1 : i32
    scf.if %7 {
      %c1_i32_3 = arith.constant 1 : i32
      %11 = arith.subi %arg1, %c1_i32_3 : i32
      %c0_i32_4 = arith.constant 0 : i32
      %12 = arith.maxsi %11, %c0_i32_4 : i32
      %c1_i32_5 = arith.constant 1 : i32
      %13 = arith.minsi %12, %c1_i32_5 : i32
      %c0 = arith.constant 0 : index
      %c0_6 = arith.constant 0 : index
      %c0_7 = arith.constant 0 : index
      %14 = vector.load %arg5[%c0, %c0_6, %c0_7] : memref<1x32x32xf32, #tpu.memory_space<vmem>>, vector<1x32x32xf32>
      %15 = vector.shape_cast %14 : vector<1x32x32xf32> to vector<32x32xf32>
      %16 = arith.index_cast %13 : i32 to index
      %c0_8 = arith.constant 0 : index
      %17 = vector.load %arg6[%16, %c0_8] : memref<2x32xf32, #tpu.memory_space<vmem>>, vector<1x32xf32>
      %c0_9 = arith.constant 0 : index
      %c0_10 = arith.constant 0 : index
      %18 = vector.load %arg11[%c0_9, %c0_10] : memref<8x32xf32, #tpu.memory_space<vmem>>, vector<8x32xf32>
      %cst = arith.constant dense<0.000000e+00> : vector<8x32xf32>
      %19 = tpu.matmul %18, %15, %cst {dimension_numbers = #tpu.dot_dimension_numbers<[1], [0], [0], [1], [0, 0, 1, 1], [], []>} : vector<8x32xf32>, vector<32x32xf32>, vector<8x32xf32> -> vector<8x32xf32>
      %20 = vector.broadcast %17 : vector<1x32xf32> to vector<8x32xf32>
      %21 = arith.addf %19, %20 : vector<8x32xf32>
      %cst_11 = arith.constant 5.000000e-01 : f32
      %22 = vector.broadcast %cst_11 : f32 to vector<8x32xf32>
      %23 = arith.mulf %22, %21 : vector<8x32xf32>
      %cst_12 = arith.constant 0.707106769 : f32
      %24 = vector.broadcast %cst_12 : f32 to vector<8x32xf32>
      %25 = arith.mulf %21, %24 : vector<8x32xf32>
      %26 = math.erf %25 : vector<8x32xf32>
      %cst_13 = arith.constant 1.000000e+00 : f32
      %27 = vector.broadcast %cst_13 : f32 to vector<8x32xf32>
      %28 = arith.addf %27, %26 : vector<8x32xf32>
      %29 = arith.mulf %23, %28 : vector<8x32xf32>
      %c0_14 = arith.constant 0 : index
      %c0_15 = arith.constant 0 : index
      %30 = vector.load %arg11[%c0_14, %c0_15] : memref<8x32xf32, #tpu.memory_space<vmem>>, vector<8x32xf32>
      tpu.vector_store %arg11[%c0_14, %c0_15], %29 {strides = array<i32>} : memref<8x32xf32, #tpu.memory_space<vmem>>, vector<8x32xf32>,
      %31 = vector.shape_cast %29 : vector<8x32xf32> to vector<1x8x32xf32>
      %c0_16 = arith.constant 0 : index
      %c0_17 = arith.constant 0 : index
      %c0_18 = arith.constant 0 : index
      %32 = vector.load %arg10[%c0_16, %c0_17, %c0_18] : memref<1x8x32xf32, #tpu.memory_space<vmem>>, vector<1x8x32xf32>
      tpu.vector_store %arg10[%c0_16, %c0_17, %c0_18], %31 {strides = array<i32>} : memref<1x8x32xf32, #tpu.memory_space<vmem>>, vector<1x8x32xf32>,
    } else {
    }
    %c3_i32 = arith.constant 3 : i32
    %8 = arith.cmpi eq, %arg1, %c3_i32 : i32
    %9 = arith.extui %8 : i1 to i32
    %c0_i32_2 = arith.constant 0 : i32
    %10 = arith.cmpi ne, %9, %c0_i32_2 : i32
    scf.if %10 {
      %c0 = arith.constant 0 : index
      %c0_3 = arith.constant 0 : index
      %11 = vector.load %arg11[%c0, %c0_3] : memref<8x32xf32, #tpu.memory_space<vmem>>, vector<8x32xf32>
      %c0_4 = arith.constant 0 : index
      %c0_5 = arith.constant 0 : index
      %12 = vector.load %arg7[%c0_4, %c0_5] : memref<32x8xf32, #tpu.memory_space<vmem>>, vector<32x8xf32>
      %cst = arith.constant dense<0.000000e+00> : vector<8x8xf32>
      %13 = tpu.matmul %11, %12, %cst {dimension_numbers = #tpu.dot_dimension_numbers<[1], [0], [0], [1], [0, 0, 1, 1], [], []>} : vector<8x32xf32>, vector<32x8xf32>, vector<8x8xf32> -> vector<8x8xf32>
      %c0_6 = arith.constant 0 : index
      %c0_7 = arith.constant 0 : index
      %14 = vector.load %arg8[%c0_6, %c0_7] : memref<1x8xf32, #tpu.memory_space<vmem>>, vector<1x8xf32>
      %15 = vector.broadcast %14 : vector<1x8xf32> to vector<8x8xf32>
      %16 = arith.addf %13, %15 : vector<8x8xf32>
      %c0_8 = arith.constant 0 : index
      %c0_9 = arith.constant 0 : index
      %17 = vector.load %arg9[%c0_8, %c0_9] : memref<8x8xf32, #tpu.memory_space<vmem>>, vector<8x8xf32>
      tpu.vector_store %arg9[%c0_8, %c0_9], %16 {strides = array<i32>} : memref<8x8xf32, #tpu.memory_space<vmem>>, vector<8x8xf32>,
    } else {
    }
    return
  }
  func.func @transform_0(%arg0: i32, %arg1: i32) -> (i32, i32) {
    %c0_i32 = arith.constant 0 : i32
    %c0_i32_0 = arith.constant 0 : i32
    return %arg0, %c0_i32 : i32, i32
  }
  func.func @transform_1(%arg0: i32, %arg1: i32) -> (i32, i32) {
    %c0_i32 = arith.constant 0 : i32
    %c0_i32_0 = arith.constant 0 : i32
    %c0_i32_1 = arith.constant 0 : i32
    return %c0_i32, %c0_i32_0 : i32, i32
  }
  func.func @transform_2(%arg0: i32, %arg1: i32) -> (i32, i32) {
    %c0_i32 = arith.constant 0 : i32
    %c0_i32_0 = arith.constant 0 : i32
    %c0_i32_1 = arith.constant 0 : i32
    return %c0_i32, %c0_i32_0 : i32, i32
  }
  func.func @transform_3(%arg0: i32, %arg1: i32) -> (i32, i32, i32) {
    %c1_i32 = arith.constant 1 : i32
    %0 = arith.subi %arg1, %c1_i32 : i32
    %c0_i32 = arith.constant 0 : i32
    %1 = arith.maxsi %0, %c0_i32 : i32
    %c1_i32_0 = arith.constant 1 : i32
    %2 = arith.minsi %1, %c1_i32_0 : i32
    %c0_i32_1 = arith.constant 0 : i32
    %c0_i32_2 = arith.constant 0 : i32
    %c0_i32_3 = arith.constant 0 : i32
    return %2, %c0_i32_1, %c0_i32_2 : i32, i32, i32
  }
  func.func @transform_4(%arg0: i32, %arg1: i32) -> (i32, i32) {
    %c0_i32 = arith.constant 0 : i32
    %c0_i32_0 = arith.constant 0 : i32
    %c0_i32_1 = arith.constant 0 : i32
    return %c0_i32, %c0_i32_0 : i32, i32
  }
  func.func @transform_5(%arg0: i32, %arg1: i32) -> (i32, i32) {
    %c0_i32 = arith.constant 0 : i32
    %c0_i32_0 = arith.constant 0 : i32
    %c0_i32_1 = arith.constant 0 : i32
    return %c0_i32, %c0_i32_0 : i32, i32
  }
  func.func @transform_6(%arg0: i32, %arg1: i32) -> (i32, i32) {
    %c0_i32 = arith.constant 0 : i32
    %c0_i32_0 = arith.constant 0 : i32
    %c0_i32_1 = arith.constant 0 : i32
    return %c0_i32, %c0_i32_0 : i32, i32
  }
  func.func @transform_7(%arg0: i32, %arg1: i32) -> (i32, i32) {
    %c0_i32 = arith.constant 0 : i32
    %c0_i32_0 = arith.constant 0 : i32
    return %arg0, %c0_i32 : i32, i32
  }
  func.func @transform_8(%arg0: i32, %arg1: i32) -> (i32, i32, i32) {
    %c2_i32 = arith.constant 2 : i32
    %0 = arith.minsi %arg1, %c2_i32 : i32
    %c0_i32 = arith.constant 0 : i32
    %c0_i32_0 = arith.constant 0 : i32
    return %0, %arg0, %c0_i32 : i32, i32, i32
  }
}

</mosaic_0001>

<llo_original>
// kernel: tpu_custom_call.1
$region0: #{tpu_custom_call.1}
  #allocation0 [shape = 'u32[]', space=smem, size = 0x4, offset = 0x4, fixed_abs, tag = 'smem constant byte address 0x4 - core index']
  #allocation1 [shape = 'u32[144,128]{1,0:T(1,128)}', space=vmem, size = 0x12000, scoped, tag = 'internal scratch']
  #allocation2 [shape = 'f32[8,32]{1,0:T(8,128)}', space=vmem, size = 0x1000, scoped, tag = 'scratch operand']
  %s0 = inlined_call_operand.vmem [shape: f32[8,16], index: 0, kind: input, shape index: {}]
  %s1 = inlined_call_operand.vmem [shape: f32[16,32], index: 1, kind: input, shape index: {}]
  %s2 = inlined_call_operand.vmem [shape: f32[1,32], index: 2, kind: input, shape index: {}]
  %s3 = inlined_call_operand.hbm [shape: f32[2,32,32], index: 3, kind: input, shape index: {}]
  %s4 = inlined_call_operand.vmem [shape: f32[2,32], index: 4, kind: input, shape index: {}]
  %s5 = inlined_call_operand.vmem [shape: f32[32,8], index: 5, kind: input, shape index: {}]
  %s6 = inlined_call_operand.vmem [shape: f32[1,8], index: 6, kind: input, shape index: {}]
  %s7 = inlined_call_operand.hbm [shape: f32[8,8], index: 7, kind: output, shape index: {0}]
  %s8 = inlined_call_operand.hbm [shape: f32[3,8,32], index: 8, kind: output, shape index: {1}]
  %9 = xla_tuple %s7, %s8
  %s10 = sld [smem:[#allocation0]]
  $region85: #{tpu_custom_call.1} parent=0
    _
  %s12 = ssub.s32 1, %s10
  %s13 = scalar_select 0, %s12, %s10
  $region1: #{tpu_custom_call.1} parent=0
    #allocation3 [shape = 'u8[32768]{0}', space=vmem, size = 0x8000, scoped, tag = 'input window, operand 3']
    #allocation4 [shape = 's32[2]{0}', space=sflag, size = 0x8, scoped, tag = 'scoped memory for tpu_custom_call.1']
    #allocation5 [shape = 's32[2]{0}', space=sflag, size = 0x8, scoped, tag = 'scoped memory for tpu_custom_call.1']
    #allocation6 [shape = 'u8[4096]{0}', space=vmem, size = 0x1000, scoped, tag = 'output window, operand 0, single buffered']
    #allocation7 [shape = 'u8[8192]{0}', space=vmem, size = 0x2000, scoped, tag = 'output window, operand 1']
    #allocation8 [shape = 's32[2]{0}', space=sflag, size = 0x8, scoped, tag = 'scoped memory for tpu_custom_call.1']
    %14 = vsyncpa [#allocation4], 0
    %s15 = scalar_lea.sflag [#allocation4], 1
    %16 = vsyncpa %s15, 0
    %17 = vsyncpa [#allocation5], 0
    %18 = vsyncpa [#allocation8], 0
    %s19 = scalar_lea.sflag [#allocation8], 1
    %20 = vsyncpa %s19, 0
    loop: start=0, step=1, limit=6
    $region2: #{tpu_custom_call.1} parent=1 // loop_pre_header
      _
    $region3: #{tpu_custom_call.1} parent=1 // loop_header
      %s22 = sphi 0, %s26
      %p23 = scmp.ge.s32.totalorder %s22, 6
      %s29 = sphi 0, %s41
      %s30 = sphi 0, %s37
      %s31 = sphi 0, %s29
      %s32 = sphi 0, %s30
      %s33 = sphi 0, %s31
      %s34 = sphi 0, %s32
      %s44 = sphi 0, %s46
      %s47 = sphi 0, %s44
      %s48 = sphi 0, %s47
      %s64 = sphi 0, %s48
      %s68 = sphi 0, %s68
      %s70 = sphi 0, %s68
      %s71 = sphi 0, %s70
      %s85 = sphi 0, %s71
      %s89 = sphi 0, %s89
      %s91 = sphi 0, %s89
      %s92 = sphi 0, %s91
      %s106 = sphi 0, %s92
      %s122 = sphi 0, %s124
      %s125 = sphi 0, %s122
      %s126 = sphi 0, %s125
      %s142 = sphi 0, %s126
      %s146 = sphi 0, %s146
      %s148 = sphi 0, %s146
      %s149 = sphi 0, %s148
      %s163 = sphi 0, %s149
      %s167 = sphi 0, %s167
      %s169 = sphi 0, %s167
      %s170 = sphi 0, %s169
      %s184 = sphi 0, %s170
      %s188 = sphi 0, %s188
      %s190 = sphi 0, %s188
      %s191 = sphi 0, %s190
      %s205 = sphi 0, %s191
      %s211 = sphi 0, %s213
      %s214 = sphi 0, %s211
      %s215 = sphi 0, %s214
      %s231 = sphi 0, %s215
      %s243 = sphi 0, %s245
      %s246 = sphi 0, %s243
      %s247 = sphi 0, %s246
      %s263 = sphi 0, %s247
    $region4: #{tpu_custom_call.1} parent=1 // loop_header_branch
      %25 = sbr.rel (%p23) target = $region8
    $region5: #{tpu_custom_call.1} parent=1 // loop_body
      %s27 = ssub.s32 %s22, 1
      %s28 = ssub.s32 %s22, 2
      %s35 = sadd.s32 1, %s30
      %p36 = scmp.ge.s32.totalorder %s35, 4
      %s37 = scalar_select %p36, 0, %s35
      %s38 = sadd.s32 1, %s29
      %s39 = scalar_select %p36, %s38, %s29
      %p40 = scmp.ge.s32.totalorder %s39, 1
      %s41 = scalar_select %p40, 0, %s39
      %s42 = ssub.s32 %s29, %s41
      %p43 = scmp.eq.s32.totalorder %s42, 0
      %s45 = sadd.s32 %s44, 1
      %s46 = scalar_select %p43, %s44, %s45
      %p49 = pneg %p43
      %p50 = scmp.eq.s32.totalorder %s22, 3
      %p51 = por %p49, %p50
      %p52 = scmp.ne.s32.totalorder %s44, %s47
      %p53 = scmp.eq.s32.totalorder %s22, 0
      %p54 = por %p52, %p53
      %p55 = scmp.ne.s32.totalorder %s44, %s47
      %p56 = scmp.eq.s32.totalorder %s27, 3
      %p57 = por %p55, %p56
      %p58 = scmp.ne.s32.totalorder %s47, %s48
      %p59 = scmp.eq.s32.totalorder %s27, 0
      %p60 = por %p58, %p59
      %p61 = scmp.ne.s32.totalorder %s47, %s48
      %p62 = scmp.eq.s32.totalorder %s28, 3
      %p63 = por %p61, %p62
      %p65 = scmp.ne.s32.totalorder %s48, %s64
      %p66 = scmp.eq.s32.totalorder %s28, 0
      %p67 = por %p65, %p66
      %s69 = sadd.s32 %s68, 1
      %p72 = scmp.eq.s32.totalorder %s22, 3
      %p73 = scmp.ne.s32.totalorder %s68, %s70
      %p74 = scmp.eq.s32.totalorder %s22, 0
      %p75 = por %p73, %p74
      %p76 = scmp.ne.s32.totalorder %s68, %s70
      %p77 = scmp.eq.s32.totalorder %s27, 3
      %p78 = por %p76, %p77
      %p79 = scmp.ne.s32.totalorder %s70, %s71
      %p80 = scmp.eq.s32.totalorder %s27, 0
      %p81 = por %p79, %p80
      %p82 = scmp.ne.s32.totalorder %s70, %s71
      %p83 = scmp.eq.s32.totalorder %s28, 3
      %p84 = por %p82, %p83
      %p86 = scmp.ne.s32.totalorder %s71, %s85
      %p87 = scmp.eq.s32.totalorder %s28, 0
      %p88 = por %p86, %p87
      %s90 = sadd.s32 %s89, 1
      %p93 = scmp.eq.s32.totalorder %s22, 3
      %p94 = scmp.ne.s32.totalorder %s89, %s91
      %p95 = scmp.eq.s32.totalorder %s22, 0
      %p96 = por %p94, %p95
      %p97 = scmp.ne.s32.totalorder %s89, %s91
      %p98 = scmp.eq.s32.totalorder %s27, 3
      %p99 = por %p97, %p98
      %p100 = scmp.ne.s32.totalorder %s91, %s92
      %p101 = scmp.eq.s32.totalorder %s27, 0
      %p102 = por %p100, %p101
      %p103 = scmp.ne.s32.totalorder %s91, %s92
      %p104 = scmp.eq.s32.totalorder %s28, 3
      %p105 = por %p103, %p104
      %p107 = scmp.ne.s32.totalorder %s92, %s106
      %p108 = scmp.eq.s32.totalorder %s28, 0
      %p109 = por %p107, %p108
      %s110 = ssub.s32 %s30, 1
      %p111 = scmp.gt.s32.totalorder %s110, 0
      %s112 = scalar_select %p111, %s110, 0
      %p113 = scmp.lt.s32.totalorder %s112, 1
      %s114 = scalar_select %p113, %s112, 1
      %s115 = ssub.s32 %s37, 1
      %p116 = scmp.gt.s32.totalorder %s115, 0
      %s117 = scalar_select %p116, %s115, 0
      %p118 = scmp.lt.s32.totalorder %s117, 1
      %s119 = scalar_select %p118, %s117, 1
      %s120 = ssub.s32 %s114, %s119
      %p121 = scmp.eq.s32.totalorder %s120, 0
      %s123 = sadd.s32 %s122, 1
      %s124 = scalar_select %p121, %s122, %s123
      %p127 = pneg %p121
      %p128 = scmp.eq.s32.totalorder %s22, 3
      %p129 = por %p127, %p128
      %p130 = scmp.ne.s32.totalorder %s122, %s125
      %p131 = scmp.eq.s32.totalorder %s22, 0
      %p132 = por %p130, %p131
      %p133 = scmp.ne.s32.totalorder %s122, %s125
      %p134 = scmp.eq.s32.totalorder %s27, 3
      %p135 = por %p133, %p134
      %p136 = scmp.ne.s32.totalorder %s125, %s126
      %p137 = scmp.eq.s32.totalorder %s27, 0
      %p138 = por %p136, %p137
      %p139 = scmp.ne.s32.totalorder %s125, %s126
      %p140 = scmp.eq.s32.totalorder %s28, 3
      %p141 = por %p139, %p140
      %p143 = scmp.ne.s32.totalorder %s126, %s142
      %p144 = scmp.eq.s32.totalorder %s28, 0
      %p145 = por %p143, %p144
      %s147 = sadd.s32 %s146, 1
      %p150 = scmp.eq.s32.totalorder %s22, 3
      %p151 = scmp.ne.s32.totalorder %s146, %s148
      %p152 = scmp.eq.s32.totalorder %s22, 0
      %p153 = por %p151, %p152
      %p154 = scmp.ne.s32.totalorder %s146, %s148
      %p155 = scmp.eq.s32.totalorder %s27, 3
      %p156 = por %p154, %p155
      %p157 = scmp.ne.s32.totalorder %s148, %s149
      %p158 = scmp.eq.s32.totalorder %s27, 0
      %p159 = por %p157, %p158
      %p160 = scmp.ne.s32.totalorder %s148, %s149
      %p161 = scmp.eq.s32.totalorder %s28, 3
      %p162 = por %p160, %p161
      %p164 = scmp.ne.s32.totalorder %s149, %s163
      %p165 = scmp.eq.s32.totalorder %s28, 0
      %p166 = por %p164, %p165
      %s168 = sadd.s32 %s167, 1
      %p171 = scmp.eq.s32.totalorder %s22, 3
      %p172 = scmp.ne.s32.totalorder %s167, %s169
      %p173 = scmp.eq.s32.totalorder %s22, 0
      %p174 = por %p172, %p173
      %p175 = scmp.ne.s32.totalorder %s167, %s169
      %p176 = scmp.eq.s32.totalorder %s27, 3
      %p177 = por %p175, %p176
      %p178 = scmp.ne.s32.totalorder %s169, %s170
      %p179 = scmp.eq.s32.totalorder %s27, 0
      %p180 = por %p178, %p179
      %p181 = scmp.ne.s32.totalorder %s169, %s170
      %p182 = scmp.eq.s32.totalorder %s28, 3
      %p183 = por %p181, %p182
      %p185 = scmp.ne.s32.totalorder %s170, %s184
      %p186 = scmp.eq.s32.totalorder %s28, 0
      %p187 = por %p185, %p186
      %s189 = sadd.s32 %s188, 1
      %p192 = scmp.eq.s32.totalorder %s22, 3
      %p193 = scmp.ne.s32.totalorder %s188, %s190
      %p194 = scmp.eq.s32.totalorder %s22, 0
      %p195 = por %p193, %p194
      %p196 = scmp.ne.s32.totalorder %s188, %s190
      %p197 = scmp.eq.s32.totalorder %s27, 3
      %p198 = por %p196, %p197
      %p199 = scmp.ne.s32.totalorder %s190, %s191
      %p200 = scmp.eq.s32.totalorder %s27, 0
      %p201 = por %p199, %p200
      %p202 = scmp.ne.s32.totalorder %s190, %s191
      %p203 = scmp.eq.s32.totalorder %s28, 3
      %p204 = por %p202, %p203
      %p206 = scmp.ne.s32.totalorder %s191, %s205
      %p207 = scmp.eq.s32.totalorder %s28, 0
      %p208 = por %p206, %p207
      %s209 = ssub.s32 %s29, %s41
      %p210 = scmp.eq.s32.totalorder %s209, 0
      %s212 = sadd.s32 %s211, 1
      %s213 = scalar_select %p210, %s211, %s212
      %p216 = pneg %p210
      %p217 = scmp.eq.s32.totalorder %s22, 3
      %p218 = por %p216, %p217
      %p219 = scmp.ne.s32.totalorder %s211, %s214
      %p220 = scmp.eq.s32.totalorder %s22, 0
      %p221 = por %p219, %p220
      %p222 = scmp.ne.s32.totalorder %s211, %s214
      %p223 = scmp.eq.s32.totalorder %s27, 3
      %p224 = por %p222, %p223
      %p225 = scmp.ne.s32.totalorder %s214, %s215
      %p226 = scmp.eq.s32.totalorder %s27, 0
      %p227 = por %p225, %p226
      %p228 = scmp.ne.s32.totalorder %s214, %s215
      %p229 = scmp.eq.s32.totalorder %s28, 3
      %p230 = por %p228, %p229
      %p232 = scmp.ne.s32.totalorder %s215, %s231
      %p233 = scmp.eq.s32.totalorder %s28, 0
      %p234 = por %p232, %p233
      %p235 = scmp.lt.s32.totalorder %s30, 2
      %s236 = scalar_select %p235, %s30, 2
      %p237 = scmp.lt.s32.totalorder %s37, 2
      %s238 = scalar_select %p237, %s37, 2
      %s239 = ssub.s32 %s236, %s238
      %s240 = ssub.s32 %s29, %s41
      %s241 = sor.u32 %s239, %s240
      %p242 = scmp.eq.s32.totalorder %s241, 0
      %s244 = sadd.s32 %s243, 1
      %s245 = scalar_select %p242, %s243, %s244
      %p248 = pneg %p242
      %p249 = scmp.eq.s32.totalorder %s22, 3
      %p250 = por %p248, %p249
      %p251 = scmp.ne.s32.totalorder %s243, %s246
      %p252 = scmp.eq.s32.totalorder %s22, 0
      %p253 = por %p251, %p252
      %p254 = scmp.ne.s32.totalorder %s243, %s246
      %p255 = scmp.eq.s32.totalorder %s27, 3
      %p256 = por %p254, %p255
      %p257 = scmp.ne.s32.totalorder %s246, %s247
      %p258 = scmp.eq.s32.totalorder %s27, 0
      %p259 = por %p257, %p258
      %p260 = scmp.ne.s32.totalorder %s246, %s247
      %p261 = scmp.eq.s32.totalorder %s28, 3
      %p262 = por %p260, %p261
      %p264 = scmp.ne.s32.totalorder %s247, %s263
      %p265 = scmp.eq.s32.totalorder %s28, 0
      %p266 = por %p264, %p265
      %p267 = scmp.le.s32.totalorder 1, %s22
      %p268 = scmp.lt.s32.totalorder %s22, 5
      %p269 = pnand %p267, %p268
      %p270 = pneg %p269
      // Predicated region
      $region9: #{tpu_custom_call.1} parent=5 // pred_check
        _
      $region10: #{tpu_custom_call.1} parent=5 // pred_check_branch
        %272 = sbr.rel (%p269) target = $region12
      $region11: #{tpu_custom_call.1} parent=5 // pred_region
        %s273 = ssub.s32 %s22, 1
        // Predicated region
        $region13: #{tpu_custom_call.1} parent=11 // pred_check
          %p274 = pneg %p60
        $region14: #{tpu_custom_call.1} parent=11 // pred_check_branch
          %276 = sbr.rel (%p274) target = $region16
        $region15: #{tpu_custom_call.1} parent=11 // pred_region
          %p277 = scmp.lt.s32.totalorder %s31, 0
          %s278 = scalar_select %p277, %s31, 0
          %s279 = smul.addr %s278, 8
          %s280 = scalar_lea.vmem %s0, %s279
        $region16: #{tpu_custom_call.1} parent=11 // pred_fallthru
          _
        // Predicated region
        $region17: #{tpu_custom_call.1} parent=11 // pred_check
          %p281 = pneg %p81
        $region18: #{tpu_custom_call.1} parent=11 // pred_check_branch
          %283 = sbr.rel (%p281) target = $region20
        $region19: #{tpu_custom_call.1} parent=11 // pred_region
          _
        $region20: #{tpu_custom_call.1} parent=11 // pred_fallthru
          _
        // Predicated region
        $region21: #{tpu_custom_call.1} parent=11 // pred_check
          %p284 = pneg %p102
        $region22: #{tpu_custom_call.1} parent=11 // pred_check_branch
          %286 = sbr.rel (%p284) target = $region24
        $region23: #{tpu_custom_call.1} parent=11 // pred_region
          _
        $region24: #{tpu_custom_call.1} parent=11 // pred_fallthru
          _
        // Predicated region
        $region25: #{tpu_custom_call.1} parent=11 // pred_check
          %p287 = pneg %p159
        $region26: #{tpu_custom_call.1} parent=11 // pred_check_branch
          %289 = sbr.rel (%p287) target = $region28
        $region27: #{tpu_custom_call.1} parent=11 // pred_region
          _
        $region28: #{tpu_custom_call.1} parent=11 // pred_fallthru
          _
        // Predicated region
        $region29: #{tpu_custom_call.1} parent=11 // pred_check
          %p290 = pneg %p180
        $region30: #{tpu_custom_call.1} parent=11 // pred_check_branch
          %292 = sbr.rel (%p290) target = $region32
        $region31: #{tpu_custom_call.1} parent=11 // pred_region
          _
        $region32: #{tpu_custom_call.1} parent=11 // pred_fallthru
          _
        // Predicated region
        $region33: #{tpu_custom_call.1} parent=11 // pred_check
          %p293 = pneg %p201
        $region34: #{tpu_custom_call.1} parent=11 // pred_check_branch
          %295 = sbr.rel (%p293) target = $region36
        $region35: #{tpu_custom_call.1} parent=11 // pred_region
          _
        $region36: #{tpu_custom_call.1} parent=11 // pred_fallthru
          _
      $region12: #{tpu_custom_call.1} parent=5 // pred_fallthru
        _
      %p296 = scmp.lt.s32.totalorder %s22, 4
      // Predicated region
      $region37: #{tpu_custom_call.1} parent=5 // pred_check
        %p297 = pneg %p296
      $region38: #{tpu_custom_call.1} parent=5 // pred_check_branch
        %299 = sbr.rel (%p297) target = $region40
      $region39: #{tpu_custom_call.1} parent=5 // pred_region
        // Predicated region
        $region41: #{tpu_custom_call.1} parent=39 // pred_check
          %p300 = pneg %p132
        $region42: #{tpu_custom_call.1} parent=39 // pred_check_branch
          %302 = sbr.rel (%p300) target = $region44
        $region43: #{tpu_custom_call.1} parent=39 // pred_region
          %s303 = sand.u32 %s122, 1
          %s304 = scalar_lea.sflag [#allocation4], %s303
          %s305 = sand.u32 %s122, 1
          %s306 = smul.addr %s305, 32
          %s307 = scalar_lea.vmem [#allocation3], %s306
          %s308 = ssub.s32 %s30, 1
          %p309 = scmp.gt.s32.totalorder %s308, 0
          %s310 = scalar_select %p309, %s308, 0
          %p311 = scmp.lt.s32.totalorder %s310, 1
          %s312 = scalar_select %p311, %s310, 1
          %s314 = ssub.s32 512, 512
          %315 = vsyncadd %s304, %s314
          %s316 = smul.addr %s312, 4
          %s317 = smul.addr %s316, 128
          %s318 = scalar_lea.hbm %s3, %s317
          %s319 = sshll.u32 %s307, 4
          %s320 = int_to_ptr.vmem [resolvable:$true] %s319
          %325 = dma.hbm_to_vmem [thread:$0]  %s318, 512, %s320, %s304, 128, 128, 8
        $region44: #{tpu_custom_call.1} parent=39 // pred_fallthru
          _
      $region40: #{tpu_custom_call.1} parent=5 // pred_fallthru
        _
      %p326 = scmp.le.s32.totalorder 1, %s22
      %p327 = scmp.lt.s32.totalorder %s22, 5
      %p328 = pnand %p326, %p327
      %p329 = pneg %p328
      // Predicated region
      $region45: #{tpu_custom_call.1} parent=5 // pred_check
        _
      $region46: #{tpu_custom_call.1} parent=5 // pred_check_branch
        %331 = sbr.rel (%p328) target = $region48
      $region47: #{tpu_custom_call.1} parent=5 // pred_region
        %s332 = ssub.s32 %s22, 1
        %s333 = sand.u32 %s125, 1
        %s334 = scalar_lea.sflag [#allocation4], %s333
        %s335 = sand.u32 %s125, 1
        %s336 = smul.addr %s335, 32
        %s337 = scalar_lea.vmem [#allocation3], %s336
        // Predicated region
        $region49: #{tpu_custom_call.1} parent=47 // pred_check
          %p338 = pneg %p138
        $region50: #{tpu_custom_call.1} parent=47 // pred_check_branch
          %340 = sbr.rel (%p338) target = $region52
        $region51: #{tpu_custom_call.1} parent=47 // pred_region
          %341 = dma.done %s334, 512
        $region52: #{tpu_custom_call.1} parent=47 // pred_fallthru
          _
        %p342 = scmp.lt.s32.totalorder %s31, 0
        %s343 = scalar_select %p342, %s31, 0
        %s344 = smul.addr %s343, 8
        %s345 = scalar_lea.vmem %s0, %s344
        %p346 = pneg %p60
        %p347 = pneg %p57
        %p348 = pneg %p81
        %p349 = pneg %p78
        %p350 = pneg %p102
        %p351 = pneg %p99
        %s352 = sand.u32 %s125, 1
        %s353 = scalar_lea.sflag [#allocation4], %s352
        %s354 = sand.u32 %s125, 1
        %s355 = smul.addr %s354, 32
        %s356 = scalar_lea.vmem [#allocation3], %s355
        %p357 = pneg %p138
        %p358 = pneg %p135
        %p359 = pneg %p159
        %p360 = pneg %p156
        %p361 = pneg %p180
        %p362 = pneg %p177
        %p363 = pneg %p201
        %p364 = pneg %p198
        %p365 = pneg %p227
        %p366 = pneg %p224
        %p367 = pneg %p259
        %p368 = pneg %p256
        %s369 = sand.u32 %s246, 1
        %s370 = scalar_lea.sflag [#allocation8], %s369
        %s371 = sand.u32 %s246, 1
        %s372 = smul.addr %s371, 8
        %s373 = scalar_lea.vmem [#allocation7], %s372
        %p374 = scmp.lt.s32.totalorder %s31, 0
        %s375 = scalar_select %p374, %s31, 0
        %s376 = smul.addr %s375, 8
        %s377 = scalar_lea.vmem %s0, %s376
        %s378 = ssub.s32 %s32, 1
        %p379 = scmp.gt.s32.totalorder %s378, 0
        %s380 = scalar_select %p379, %s378, 0
        %p381 = scmp.lt.s32.totalorder %s380, 1
        %s382 = scalar_select %p381, %s380, 1
        %p383 = scmp.lt.s32.totalorder %s32, 2
        %s384 = scalar_select %p383, %s32, 2
        %p385 = scmp.eq.s32.totalorder %s32, 0
        // Predicated region
        $region53: #{tpu_custom_call.1} parent=47 // pred_check
          %p386 = pneg %p385
        $region54: #{tpu_custom_call.1} parent=47 // pred_check_branch
          %388 = sbr.rel (%p386) target = $region56
        $region55: #{tpu_custom_call.1} parent=47 // pred_region
          %v389 = vld [vmem:[%s377] sm:$0xff]
          %v390 = vld [vmem:[%s1] sm:$0xff]
          %v391 = vld [vmem:[%s1 + $0x8] sm:$0xff]
          %v392 = vld [vmem:[%s2] sm:$0x1]
          %v394 = vlaneseq
          %v395 = vshrl.u32 %v394, 7
          %v396 = vsub.s32 0, %v395
          %v397 = vrot.slane %v392, %v396
          %vm399 = vcmask 130048
          %v401 = vsel %vm399, %v389, 0
          %403 = vmatprep.subr.mxu0 0.0
          %404 = vmatpush1.msra.mxu0 %v390
          %405 = vmatprep.subr.mxu0 0.0
          %406 = vmatpush1.msra.mxu0 %v391
          %407 = vmatprep.subr.mxu0 0.0
          %408 = vmatpush1.msra.mxu0 0.0
          %409 = vmatprep.subr.mxu0 0.0
          %410 = vmatpush1.msra.mxu0 0.0
          %411 = vmatprep.subr.mxu0 0.0
          %412 = vmatpush1.msra.mxu0 0.0
          %413 = vmatprep.subr.mxu0 0.0
          %414 = vmatpush1.msra.mxu0 0.0
          %415 = vmatprep.subr.mxu0 0.0
          %416 = vmatpush1.msra.mxu0 0.0
          %417 = vmatprep.subr.mxu0 0.0
          %418 = vmatpush1.msra.mxu0 0.0
          %419 = vmatprep.subr.mxu0 0.0
          %420 = vmatpush1.msra.mxu0 0.0
          %421 = vmatprep.subr.mxu0 0.0
          %422 = vmatpush1.msra.mxu0 0.0
          %423 = vmatprep.subr.mxu0 0.0
          %424 = vmatpush1.msra.mxu0 0.0
          %425 = vmatprep.subr.mxu0 0.0
          %426 = vmatpush1.msra.mxu0 0.0
          %427 = vmatprep.subr.mxu0 0.0
          %428 = vmatpush1.msra.mxu0 0.0
          %429 = vmatprep.subr.mxu0 0.0
          %430 = vmatpush1.msra.mxu0 0.0
          %431 = vmatprep.subr.mxu0 0.0
          %432 = vmatpush1.msra.mxu0 0.0
          %433 = vmatprep.subr.mxu0 0.0
          %434 = vmatpush1.msra.mxu0 0.0
          %435 = vmatprep.subr.mxu0 0.0
          %436 = vmatpush1.msra.mxu0 0.0
          %437 = vmatprep.subr.mxu0 0.0
          %438 = vmatpush1.msra.mxu0 0.0
          %439 = vmatprep.subr.mxu0 0.0
          %440 = vmatpush1.msra.mxu0 0.0
          %441 = vmatprep.subr.mxu0 0.0
          %442 = vmatpush1.msra.mxu0 0.0
          %443 = vmatprep.subr.mxu0 0.0
          %444 = vmatpush1.msra.mxu0 0.0
          %445 = vmatprep.subr.mxu0 0.0
          %446 = vmatpush1.msra.mxu0 0.0
          %447 = vmatprep.subr.mxu0 0.0
          %448 = vmatpush1.msra.mxu0 0.0
          %449 = vmatprep.subr.mxu0 0.0
          %450 = vmatpush1.msra.mxu0 0.0
          %451 = vmatprep.subr.mxu0 0.0
          %452 = vmatpush1.msra.mxu0 0.0
          %453 = vmatprep.subr.mxu0 0.0
          %454 = vmatpush1.msra.mxu0 0.0
          %455 = vmatprep.subr.mxu0 0.0
          %456 = vmatpush1.msra.mxu0 0.0
          %457 = vmatprep.subr.mxu0 0.0
          %458 = vmatpush1.msra.mxu0 0.0
          %459 = vmatprep.subr.mxu0 0.0
          %460 = vmatpush1.msra.mxu0 0.0
          %461 = vmatprep.subr.mxu0 0.0
          %462 = vmatpush1.msra.mxu0 0.0
          %463 = vmatprep.subr.mxu0 0.0
          %464 = vmatpush1.msra.mxu0 0.0
          %465 = vmatprep.subr.mxu0 0.0
          %466 = vmatpush1.msra.mxu0 0.0
          %467 = vmatprep.mubr.f32.mxu0 0.0
          %468 = vmatmul.mubr.f32.gmra.mrb[0].mxu0 %v401
          %v469 = vpop.f32.mrb[0].mxu0
          %v470 = vadd.f32 %v397, %v469
          %v471 = vpop.f32.mrb[0].mxu0
          %472 = vdwg.mxu0
          %v473 = vmul.f32 %v470, 0.5
          %v474 = vmul.f32 %v470, 0.70710677
          %v475 = verf.f32.pop %v474
          %v476 = vadd.f32 %v475, 1.0
          %v477 = vmul.f32 %v473, %v476
          %vm478 = vcmask 261120
          %479 = vst.msk [vmem:[#allocation2] sm:$0xff] %vm478, %v477
          %480 = vst.msk [vmem:[%s373] sm:$0xff] %vm478, %v477
        $region56: #{tpu_custom_call.1} parent=47 // pred_fallthru
          _
        %p481 = scmp.ge.s32.totalorder %s32, 1
        %p482 = scmp.le.s32.totalorder %s32, 2
        %p483 = pnand %p481, %p482
        %p484 = pneg %p483
        // Predicated region
        $region57: #{tpu_custom_call.1} parent=47 // pred_check
          _
        $region58: #{tpu_custom_call.1} parent=47 // pred_check_branch
          %486 = sbr.rel (%p483) target = $region60
        $region59: #{tpu_custom_call.1} parent=47 // pred_region
          %s487 = ssub.s32 %s32, 1
          %p488 = scmp.gt.s32.totalorder %s487, 0
          %s489 = scalar_select %p488, %s487, 0
          %p490 = scmp.lt.s32.totalorder %s489, 1
          %s491 = scalar_select %p490, %s489, 1
          %v492 = vld [vmem:[%s337] sm:$0xff]
          %v493 = vld [vmem:[%s337 + $0x8] sm:$0xff]
          %v494 = vld [vmem:[%s337 + $0x10] sm:$0xff]
          %v495 = vld [vmem:[%s337 + $0x18] sm:$0xff]
          %s496 = scalar_lea.vmem %s4, %s491
          %v497 = vld [vmem:[%s496] sm:$0x1]
          %v498 = vld [vmem:[#allocation2] sm:$0xff]
          %v499 = vlaneseq
          %v500 = vshrl.u32 %v499, 7
          %v501 = vsub.s32 0, %v500
          %v502 = vrot.slane %v497, %v501
          %vm503 = vcmask 261120
          %v505 = vsel %vm503, %v498, 0
          %507 = vmatprep.subr.mxu0 0.0
          %508 = vmatpush1.msra.mxu0 %v492
          %509 = vmatprep.subr.mxu0 0.0
          %510 = vmatpush1.msra.mxu0 %v493
          %511 = vmatprep.subr.mxu0 0.0
          %512 = vmatpush1.msra.mxu0 %v494
          %513 = vmatprep.subr.mxu0 0.0
          %514 = vmatpush1.msra.mxu0 %v495
          %515 = vmatprep.subr.mxu0 0.0
          %516 = vmatpush1.msra.mxu0 0.0
          %517 = vmatprep.subr.mxu0 0.0
          %518 = vmatpush1.msra.mxu0 0.0
          %519 = vmatprep.subr.mxu0 0.0
          %520 = vmatpush1.msra.mxu0 0.0
          %521 = vmatprep.subr.mxu0 0.0
          %522 = vmatpush1.msra.mxu0 0.0
          %523 = vmatprep.subr.mxu0 0.0
          %524 = vmatpush1.msra.mxu0 0.0
          %525 = vmatprep.subr.mxu0 0.0
          %526 = vmatpush1.msra.mxu0 0.0
          %527 = vmatprep.subr.mxu0 0.0
          %528 = vmatpush1.msra.mxu0 0.0
          %529 = vmatprep.subr.mxu0 0.0
          %530 = vmatpush1.msra.mxu0 0.0
          %531 = vmatprep.subr.mxu0 0.0
          %532 = vmatpush1.msra.mxu0 0.0
          %533 = vmatprep.subr.mxu0 0.0
          %534 = vmatpush1.msra.mxu0 0.0
          %535 = vmatprep.subr.mxu0 0.0
          %536 = vmatpush1.msra.mxu0 0.0
          %537 = vmatprep.subr.mxu0 0.0
          %538 = vmatpush1.msra.mxu0 0.0
          %539 = vmatprep.subr.mxu0 0.0
          %540 = vmatpush1.msra.mxu0 0.0
          %541 = vmatprep.subr.mxu0 0.0
          %542 = vmatpush1.msra.mxu0 0.0
          %543 = vmatprep.subr.mxu0 0.0
          %544 = vmatpush1.msra.mxu0 0.0
          %545 = vmatprep.subr.mxu0 0.0
          %546 = vmatpush1.msra.mxu0 0.0
          %547 = vmatprep.subr.mxu0 0.0
          %548 = vmatpush1.msra.mxu0 0.0
          %549 = vmatprep.subr.mxu0 0.0
          %550 = vmatpush1.msra.mxu0 0.0
          %551 = vmatprep.subr.mxu0 0.0
          %552 = vmatpush1.msra.mxu0 0.0
          %553 = vmatprep.subr.mxu0 0.0
          %554 = vmatpush1.msra.mxu0 0.0
          %555 = vmatprep.subr.mxu0 0.0
          %556 = vmatpush1.msra.mxu0 0.0
          %557 = vmatprep.subr.mxu0 0.0
          %558 = vmatpush1.msra.mxu0 0.0
          %559 = vmatprep.subr.mxu0 0.0
          %560 = vmatpush1.msra.mxu0 0.0
          %561 = vmatprep.subr.mxu0 0.0
          %562 = vmatpush1.msra.mxu0 0.0
          %563 = vmatprep.subr.mxu0 0.0
          %564 = vmatpush1.msra.mxu0 0.0
          %565 = vmatprep.subr.mxu0 0.0
          %566 = vmatpush1.msra.mxu0 0.0
          %567 = vmatprep.subr.mxu0 0.0
          %568 = vmatpush1.msra.mxu0 0.0
          %569 = vmatprep.subr.mxu0 0.0
          %570 = vmatpush1.msra.mxu0 0.0
          %571 = vmatprep.mubr.f32.mxu0 0.0
          %572 = vmatmul.mubr.f32.gmra.mrb[0].mxu0 %v505
          %v573 = vpop.f32.mrb[0].mxu0
          %v574 = vadd.f32 %v502, %v573
          %v575 = vpop.f32.mrb[0].mxu0
          %576 = vdwg.mxu0
          %v577 = vmul.f32 %v574, 0.5
          %v578 = vmul.f32 %v574, 0.70710677
          %v579 = verf.f32.pop %v578
          %v580 = vadd.f32 %v579, 1.0
          %v581 = vmul.f32 %v577, %v580
          %582 = vst.msk [vmem:[#allocation2] sm:$0xff] %vm503, %v581
          %583 = vst.msk [vmem:[%s373] sm:$0xff] %vm503, %v581
        $region60: #{tpu_custom_call.1} parent=47 // pred_fallthru
          _
        %p584 = scmp.eq.s32.totalorder %s32, 3
        // Predicated region
        $region61: #{tpu_custom_call.1} parent=47 // pred_check
          %p585 = pneg %p584
        $region62: #{tpu_custom_call.1} parent=47 // pred_check_branch
          %587 = sbr.rel (%p585) target = $region64
        $region63: #{tpu_custom_call.1} parent=47 // pred_region
          %v588 = vld [vmem:[#allocation2] sm:$0xff]
          %v589 = vld [vmem:[%s5] sm:$0xff]
          %v590 = vld [vmem:[%s5 + $0x8] sm:$0xff]
          %v591 = vld [vmem:[%s5 + $0x10] sm:$0xff]
          %v592 = vld [vmem:[%s5 + $0x18] sm:$0xff]
          %v593 = vld [vmem:[%s6] sm:$0x1]
          %v595 = vlaneseq
          %v596 = vshrl.u32 %v595, 7
          %v597 = vsub.s32 0, %v596
          %v598 = vrot.slane %v593, %v597
          %vm600 = vcmask 261120
          %v602 = vsel %vm600, %v588, 0
          %604 = vmatprep.subr.mxu0 0.0
          %605 = vmatpush1.msra.mxu0 %v589
          %606 = vmatprep.subr.mxu0 0.0
          %607 = vmatpush1.msra.mxu0 %v590
          %608 = vmatprep.subr.mxu0 0.0
          %609 = vmatpush1.msra.mxu0 %v591
          %610 = vmatprep.subr.mxu0 0.0
          %611 = vmatpush1.msra.mxu0 %v592
          %612 = vmatprep.subr.mxu0 0.0
          %613 = vmatpush1.msra.mxu0 0.0
          %614 = vmatprep.subr.mxu0 0.0
          %615 = vmatpush1.msra.mxu0 0.0
          %616 = vmatprep.subr.mxu0 0.0
          %617 = vmatpush1.msra.mxu0 0.0
          %618 = vmatprep.subr.mxu0 0.0
          %619 = vmatpush1.msra.mxu0 0.0
          %620 = vmatprep.subr.mxu0 0.0
          %621 = vmatpush1.msra.mxu0 0.0
          %622 = vmatprep.subr.mxu0 0.0
          %623 = vmatpush1.msra.mxu0 0.0
          %624 = vmatprep.subr.mxu0 0.0
          %625 = vmatpush1.msra.mxu0 0.0
          %626 = vmatprep.subr.mxu0 0.0
          %627 = vmatpush1.msra.mxu0 0.0
          %628 = vmatprep.subr.mxu0 0.0
          %629 = vmatpush1.msra.mxu0 0.0
          %630 = vmatprep.subr.mxu0 0.0
          %631 = vmatpush1.msra.mxu0 0.0
          %632 = vmatprep.subr.mxu0 0.0
          %633 = vmatpush1.msra.mxu0 0.0
          %634 = vmatprep.subr.mxu0 0.0
          %635 = vmatpush1.msra.mxu0 0.0
          %636 = vmatprep.subr.mxu0 0.0
          %637 = vmatpush1.msra.mxu0 0.0
          %638 = vmatprep.subr.mxu0 0.0
          %639 = vmatpush1.msra.mxu0 0.0
          %640 = vmatprep.subr.mxu0 0.0
          %641 = vmatpush1.msra.mxu0 0.0
          %642 = vmatprep.subr.mxu0 0.0
          %643 = vmatpush1.msra.mxu0 0.0
          %644 = vmatprep.subr.mxu0 0.0
          %645 = vmatpush1.msra.mxu0 0.0
          %646 = vmatprep.subr.mxu0 0.0
          %647 = vmatpush1.msra.mxu0 0.0
          %648 = vmatprep.subr.mxu0 0.0
          %649 = vmatpush1.msra.mxu0 0.0
          %650 = vmatprep.subr.mxu0 0.0
          %651 = vmatpush1.msra.mxu0 0.0
          %652 = vmatprep.subr.mxu0 0.0
          %653 = vmatpush1.msra.mxu0 0.0
          %654 = vmatprep.subr.mxu0 0.0
          %655 = vmatpush1.msra.mxu0 0.0
          %656 = vmatprep.subr.mxu0 0.0
          %657 = vmatpush1.msra.mxu0 0.0
          %658 = vmatprep.subr.mxu0 0.0
          %659 = vmatpush1.msra.mxu0 0.0
          %660 = vmatprep.subr.mxu0 0.0
          %661 = vmatpush1.msra.mxu0 0.0
          %662 = vmatprep.subr.mxu0 0.0
          %663 = vmatpush1.msra.mxu0 0.0
          %664 = vmatprep.subr.mxu0 0.0
          %665 = vmatpush1.msra.mxu0 0.0
          %666 = vmatprep.subr.mxu0 0.0
          %667 = vmatpush1.msra.mxu0 0.0
          %668 = vmatprep.mubr.f32.mxu0 0.0
          %669 = vmatmul.mubr.f32.gmra.mrb[0].mxu0 %v602
          %v670 = vpop.f32.mrb[0].mxu0
          %v671 = vadd.f32 %v598, %v670
          %v672 = vpop.f32.mrb[0].mxu0
          %673 = vdwg.mxu0
          %vm674 = vcmask 64512
          %675 = vst.msk [vmem:[#allocation6] sm:$0xff] %vm674, %v671
        $region64: #{tpu_custom_call.1} parent=47 // pred_fallthru
          _
        %s676 = sand.u32 %s246, 1
        %s677 = scalar_lea.sflag [#allocation8], %s676
        %s678 = sand.u32 %s246, 1
        %s679 = smul.addr %s678, 8
        %s680 = scalar_lea.vmem [#allocation7], %s679
        // Predicated region
        $region65: #{tpu_custom_call.1} parent=47 // pred_check
          %p681 = pneg %p224
        $region66: #{tpu_custom_call.1} parent=47 // pred_check_branch
          %683 = sbr.rel (%p681) target = $region68
        $region67: #{tpu_custom_call.1} parent=47 // pred_region
          %s685 = ssub.s32 128, 128
          %686 = vsyncadd [#allocation5], %s685
          %s687 = smul.addr %s31, 128
          %s688 = scalar_lea.hbm %s7, %s687
          %s690 = sshll.u32 [#allocation6], 4
          %s691 = int_to_ptr.vmem [resolvable:$true] %s690
          %693 = dma.vmem_to_hbm [thread:$0]  %s691, 128, %s688, [#allocation5]
        $region68: #{tpu_custom_call.1} parent=47 // pred_fallthru
          _
        // Predicated region
        $region69: #{tpu_custom_call.1} parent=47 // pred_check
          %p694 = pneg %p256
        $region70: #{tpu_custom_call.1} parent=47 // pred_check_branch
          %696 = sbr.rel (%p694) target = $region72
        $region71: #{tpu_custom_call.1} parent=47 // pred_region
          %p697 = scmp.lt.s32.totalorder %s32, 2
          %s698 = scalar_select %p697, %s32, 2
          %s700 = ssub.s32 128, 128
          %701 = vsyncadd %s677, %s700
          %s702 = sadd.s32 %s31, %s698
          %s703 = smul.addr %s702, 128
          %s704 = scalar_lea.hbm %s8, %s703
          %s706 = sshll.u32 %s680, 4
          %s707 = int_to_ptr.vmem [resolvable:$true] %s706
          %709 = dma.vmem_to_hbm [thread:$0]  %s707, 128, %s704, %s677
        $region72: #{tpu_custom_call.1} parent=47 // pred_fallthru
          _
        // Predicated region
        $region73: #{tpu_custom_call.1} parent=47 // pred_check
          %p710 = pneg %p224
        $region74: #{tpu_custom_call.1} parent=47 // pred_check_branch
          %712 = sbr.rel (%p710) target = $region76
        $region75: #{tpu_custom_call.1} parent=47 // pred_region
          %713 = dma.done [#allocation5], 128
        $region76: #{tpu_custom_call.1} parent=47 // pred_fallthru
          _
      $region48: #{tpu_custom_call.1} parent=5 // pred_fallthru
        _
      %p714 = scmp.le.s32.totalorder 2, %s22
      // Predicated region
      $region77: #{tpu_custom_call.1} parent=5 // pred_check
        %p715 = pneg %p714
      $region78: #{tpu_custom_call.1} parent=5 // pred_check_branch
        %717 = sbr.rel (%p715) target = $region80
      $region79: #{tpu_custom_call.1} parent=5 // pred_region
        %s718 = ssub.s32 %s22, 2
        // Predicated region
        $region81: #{tpu_custom_call.1} parent=79 // pred_check
          %p719 = pneg %p262
        $region82: #{tpu_custom_call.1} parent=79 // pred_check_branch
          %721 = sbr.rel (%p719) target = $region84
        $region83: #{tpu_custom_call.1} parent=79 // pred_region
          %s722 = sand.u32 %s247, 1
          %s723 = scalar_lea.sflag [#allocation8], %s722
          %s724 = sand.u32 %s247, 1
          %s725 = smul.addr %s724, 8
          %s726 = scalar_lea.vmem [#allocation7], %s725
          %727 = dma.done %s723, 128
        $region84: #{tpu_custom_call.1} parent=79 // pred_fallthru
          _
      $region80: #{tpu_custom_call.1} parent=5 // pred_fallthru
        _
    $region6: #{tpu_custom_call.1} parent=1 // loop_footer
      %s26 = sadd.s32 1, %s22
    $region7: #{tpu_custom_call.1} parent=1 // loop_footer_branch
      %21 = sbr.rel target = $region3
    $region8: #{tpu_custom_call.1} parent=1 // loop_exit
      _
    %728 = vsyncpa [#allocation4], 1
    %s729 = scalar_lea.sflag [#allocation4], 1
    %730 = vsyncpa %s729, 1
    %731 = vsyncpa [#allocation5], 1
    %s732 = scalar_lea.sflag [#allocation5], 1
    %733 = vsyncpa %s732, 1
    %734 = vsyncpa [#allocation8], 1
    %s735 = scalar_lea.sflag [#allocation8], 1
    %736 = vsyncpa %s735, 1

</llo_original>
